<compile_context>
chip_gen: v7x
topology: tpu7x:2x2x1
jax: 0.10.0
libtpu: 0.0.40
codegen_flags: <defaults>
</compile_context>

<pallas_src>
import math

import jax
import jax.numpy as jnp
from jax.experimental import pallas as pl
from jax.experimental.pallas import tpu as pltpu


def _pe_add_kernel(x_ref, pe_ref, o_ref):
    # Works for both layouts:
    #   flat: x (Bt, Ct)    + pe (1, Ct)     -> o (Bt, Ct)
    #   3-D : x (Bt, St, D) + pe (1, St, D)  -> o (Bt, St, D)
    # The leading-dim broadcast is free vreg reuse on the VPU.
    o_ref[...] = x_ref[...] + pe_ref[...]


def make_positional_encoding_table(d_model, max_seq_len, dtype=jnp.float32):
    """Same sin/cos table as the PyTorch module's `pe` buffer, already squeezed
    to (max_seq_len, d_model) (the module stores (max_seq_len, 1, d_model) and
    indexes [:S, -1, :] in forward, which squeezes the middle dim)."""
    position = jnp.arange(max_seq_len, dtype=jnp.float32)[:, None]              # (L, 1)
    div_term = jnp.exp(
        jnp.arange(0, d_model, 2, dtype=jnp.float32) * (-math.log(10000.0) / d_model)
    )                                                                            # (D/2,)
    angles = position * div_term                                                 # (L, D/2)
    pe = jnp.zeros((max_seq_len, d_model), jnp.float32)
    pe = pe.at[:, 0::2].set(jnp.sin(angles))
    pe = pe.at[:, 1::2].set(jnp.cos(angles))
    return pe.astype(dtype)


# Conservative VMEM budgets (bytes).  Worst case working set is
#   2 x in-tile  +  2 x out-tile  +  (<=2 x) PE block
# which with these numbers stays around ~16 MiB -- safely inside the 32 MiB
# explicit limit below (v7x physical VMEM is 64 MiB, v5e scoped default 16 MiB).
_TILE_TARGET_BYTES = 3 * 1024 * 1024   # per-buffer x/out tile target
_PE_BUDGET_BYTES = 2 * 1024 * 1024     # resident PE block budget (incl. padding)
_VMEM_LIMIT_BYTES = 32 * 1024 * 1024   # safe explicit limit on v5e/v6e/v7x


def _sublane(itemsize):
    if itemsize >= 4:
        return 8
    if itemsize == 2:
        return 16
    return 32


def positional_encoding_forward(x, pe):
    """x: (B, S, d_model) batch-first.  pe: (max_seq_len, d_model) buffer.
    Returns x + pe[:S, :] broadcast over the batch.
    # TODO(synk): nn.Dropout(p=0.1) is identity at inference; training-mode
    # stochastic dropout (pltpu PRNG masking + 1/(1-p) scaling) not implemented.
    # TODO(synk): pe is cast to x.dtype before the add; PyTorch would promote a
    # bf16 x to float32 when adding the float32 buffer (tiny numeric drift).
    """
    B, S, D = x.shape
    assert pe.shape[1] == D and pe.shape[0] >= S

    dtype = x.dtype
    itemsize = jnp.dtype(dtype).itemsize
    sub = _sublane(itemsize)
    pe_s = pe[:S, :].astype(dtype)

    flops = B * S * D
    bytes_accessed = (2 * B * S * D + S * D) * itemsize
    cost = pl.CostEstimate(flops=flops, transcendentals=0,
                           bytes_accessed=bytes_accessed)
    cparams = pltpu.CompilerParams(
        dimension_semantics=("parallel", "parallel"),
        vmem_limit_bytes=_VMEM_LIMIT_BYTES,
    )

    if D % 128 == 0:
        # ---------- 3-D layout: blocks (Bt, St, D), PE block (1, St, D) ----------
        row_bytes = D * itemsize  # one (1, 1, D) slab
        budget = min(_TILE_TARGET_BYTES, _PE_BUDGET_BYTES)
        max_st = max(sub, (budget // row_bytes) // sub * sub)
        St = S if S <= max_st else max_st                    # multiple of sub, or == S
        tile_rows = max(1, _TILE_TARGET_BYTES // (St * row_bytes))
        Bt = min(B, tile_rows)
        # v7x megacore: make sure there are >= 2 grid blocks when possible.
        if Bt == B and St == S and B >= 2:
            Bt = pl.cdiv(B, 2)
        grid = (pl.cdiv(B, Bt), pl.cdiv(S, St))

        out = pl.pallas_call(
            _pe_add_kernel,
            out_shape=jax.ShapeDtypeStruct((B, S, D), dtype),
            grid_spec=pltpu.PrefetchScalarGridSpec(
                num_scalar_prefetch=0,
                grid=grid,
                in_specs=[
                    pl.BlockSpec((Bt, St, D), lambda i, j: (i, j, 0)),   # x tile
                    pl.BlockSpec((1, St, D), lambda i, j: (0, j, 0)),    # PE block
                ],
                out_specs=pl.BlockSpec((Bt, St, D), lambda i, j: (i, j, 0)),
            ),
            compiler_params=cparams,
            cost_estimate=cost,
        )(x, pe_s[None, :, :])
        return out

    # ---------- flattened layout (small d_model): blocks (Bt, Ct) ----------
    F = S * D
    x2 = x.reshape(B, F)
    pe_row = pe_s.reshape(1, F)

    # Lane tile: multiple of 128 (or the full row).  The (1, Ct) PE block pads
    # its single sublane row to 8, so cap Ct by _PE_BUDGET_BYTES / (8*itemsize).
    max_ct = min(_TILE_TARGET_BYTES // itemsize, _PE_BUDGET_BYTES // (8 * itemsize))
    if F % 128 == 0 and F > max_ct:
        Ct = max(128, (max_ct // 128) * 128)
    else:
        Ct = F                                   # full row (legal even if < 128 lanes)

    tile_rows = max(1, _TILE_TARGET_BYTES // (Ct * itemsize))
    if tile_rows >= B:
        Bt = B
    else:
        Bt = min(B, max(sub, (tile_rows // sub) * sub))      # multiple of sub, or == B
    # v7x megacore: >= 2 grid blocks when the whole problem fits in one tile.
    if Bt == B and pl.cdiv(F, Ct) == 1 and B >= 2 * sub:
        Bt = ((pl.cdiv(B, 2) + sub - 1) // sub) * sub

    grid = (pl.cdiv(B, Bt), pl.cdiv(F, Ct))

    out = pl.pallas_call(
        _pe_add_kernel,
        out_shape=jax.ShapeDtypeStruct((B, F), dtype),
        grid_spec=pltpu.PrefetchScalarGridSpec(
            num_scalar_prefetch=0,
            grid=grid,
            in_specs=[
                pl.BlockSpec((Bt, Ct), lambda i, j: (i, j)),   # x tile
                pl.BlockSpec((1, Ct), lambda i, j: (0, j)),    # PE row tile
            ],
            out_specs=pl.BlockSpec((Bt, Ct), lambda i, j: (i, j)),
        ),
        compiler_params=cparams,
        cost_estimate=cost,
    )(x2, pe_row)

    return out.reshape(B, S, D)


if __name__ == "__main__":
    key = jax.random.PRNGKey(0)

    # ---- case 1: module-sized demo (small d_model -> flattened lane layout) ----
    D_MODEL, MAX_SEQ_LEN = 4, 64
    B, S = 2, 8
    x = jax.random.normal(key, (B, S, D_MODEL), jnp.float32)
    pe = make_positional_encoding_table(D_MODEL, MAX_SEQ_LEN)
    out = jax.block_until_ready(positional_encoding_forward(x, pe))
    ref = x + pe[:S, :][None, :, :]
    assert out.shape == (B, S, D_MODEL) and out.dtype == jnp.float32
    assert jnp.allclose(out, ref, atol=1e-6, rtol=1e-6)

    # ---- case 2: lane-aligned d_model (exercises the 3-D, non-flattened path) ----
    D_MODEL2, MAX_SEQ_LEN2 = 128, 64
    x2 = jax.random.normal(jax.random.PRNGKey(1), (B, S, D_MODEL2), jnp.float32)
    pe2 = make_positional_encoding_table(D_MODEL2, MAX_SEQ_LEN2)
    out2 = jax.block_until_ready(positional_encoding_forward(x2, pe2))
    ref2 = x2 + pe2[:S, :][None, :, :]
    assert out2.shape == (B, S, D_MODEL2) and out2.dtype == jnp.float32
    assert jnp.allclose(out2, ref2, atol=1e-6, rtol=1e-6)

    print("KERNEL_OK")
</pallas_src>

<mosaic_0001>
module attributes {stable_mosaic.version = 11 : i64} {
  func.func @_pe_add_kernel(%arg0: i32, %arg1: i32, %arg2: memref<2x32xf32, #tpu.memory_space<vmem>>, %arg3: memref<1x32xf32, #tpu.memory_space<vmem>>, %arg4: memref<2x32xf32, #tpu.memory_space<vmem>>) attributes {dimension_semantics = [#tpu.dimension_semantics<parallel>, #tpu.dimension_semantics<parallel>], iteration_bounds = array<i64: 1, 1>, scalar_prefetch = 0 : i64, scratch_operands = 0 : i64, tpu.core_type = #tpu.core_type<tc>, window_params = [{transform_indices = @transform_0, window_bounds = array<i64: 2, 32>}, {transform_indices = @transform_1, window_bounds = array<i64: 1, 32>}, {transform_indices = @transform_2, window_bounds = array<i64: 2, 32>}]} {
    %c0 = arith.constant 0 : index
    %c0_0 = arith.constant 0 : index
    %0 = vector.load %arg2[%c0, %c0_0] : memref<2x32xf32, #tpu.memory_space<vmem>>, vector<2x32xf32>
    %c0_1 = arith.constant 0 : index
    %c0_2 = arith.constant 0 : index
    %1 = vector.load %arg3[%c0_1, %c0_2] : memref<1x32xf32, #tpu.memory_space<vmem>>, vector<1x32xf32>
    %2 = vector.broadcast %1 : vector<1x32xf32> to vector<2x32xf32>
    %3 = arith.addf %0, %2 : vector<2x32xf32>
    %c0_3 = arith.constant 0 : index
    %c0_4 = arith.constant 0 : index
    %4 = vector.load %arg4[%c0_3, %c0_4] : memref<2x32xf32, #tpu.memory_space<vmem>>, vector<2x32xf32>
    tpu.vector_store %arg4[%c0_3, %c0_4], %3 {strides = array<i32>} : memref<2x32xf32, #tpu.memory_space<vmem>>, vector<2x32xf32>,
    return
  }
  func.func @transform_0(%arg0: i32, %arg1: i32) -> (i32, i32) {
    %c0_i32 = arith.constant 0 : i32
    return %arg0, %arg1 : i32, i32
  }
  func.func @transform_1(%arg0: i32, %arg1: i32) -> (i32, i32) {
    %c0_i32 = arith.constant 0 : i32
    %c0_i32_0 = arith.constant 0 : i32
    return %c0_i32, %arg1 : i32, i32
  }
  func.func @transform_2(%arg0: i32, %arg1: i32) -> (i32, i32) {
    %c0_i32 = arith.constant 0 : i32
    return %arg0, %arg1 : i32, i32
  }
}

</mosaic_0001>

<llo_original>
// kernel: tpu_custom_call.1
$region0: #{tpu_custom_call.1}
  #allocation0 [shape = 'u32[]', space=smem, size = 0x4, offset = 0x4, fixed_abs, tag = 'smem constant byte address 0x4 - core index']
  #allocation1 [shape = 'u32[144,128]{1,0:T(1,128)}', space=vmem, size = 0x12000, scoped, tag = 'internal scratch']
  %s0 = inlined_call_operand.hbm [shape: f32[2,32], index: 0, kind: input, shape index: {}]
  %s1 = inlined_call_operand.vmem [shape: f32[1,32], index: 1, kind: input, shape index: {}]
  %s2 = inlined_call_operand.hbm [shape: f32[2,32], index: 2, kind: output, shape index: {}]
  %s3 = sld [smem:[#allocation0]]
  $region22: #{tpu_custom_call.1} parent=0
    _
  %s5 = ssub.s32 1, %s3
  %s6 = scalar_select 0, %s5, %s3
  $region1: #{tpu_custom_call.1} parent=0
    #allocation2 [shape = 'u8[1024]{0}', space=vmem, size = 0x400, scoped, tag = 'input window, operand 0, single buffered']
    #allocation3 [shape = 's32[1]{0}', space=sflag, size = 0x4, scoped, tag = 'scoped memory for tpu_custom_call.1']
    #allocation4 [shape = 's32[1]{0}', space=sflag, size = 0x4, scoped, tag = 'scoped memory for tpu_custom_call.1']
    #allocation5 [shape = 'u8[1024]{0}', space=vmem, size = 0x400, scoped, tag = 'output window, operand 0, single buffered']
    %7 = vsyncpa [#allocation3], 0
    %8 = vsyncpa [#allocation4], 0
    // Predicated region
    $region2: #{tpu_custom_call.1} parent=1 // pred_check
      _
    $region3: #{tpu_custom_call.1} parent=1 // pred_check_branch
      %10 = sbr.rel (0) target = $region5
    $region4: #{tpu_custom_call.1} parent=1 // pred_region
      %s12 = ssub.s32 32, 32
      %13 = vsyncadd [#allocation3], %s12
      %s15 = sshll.u32 [#allocation2], 4
      %s16 = int_to_ptr.vmem [resolvable:$true] %s15
      %18 = dma.hbm_to_vmem [thread:$0]  %s0, 32, %s16, [#allocation3]
    $region5: #{tpu_custom_call.1} parent=1 // pred_fallthru
      _
    // Predicated region
    $region6: #{tpu_custom_call.1} parent=1 // pred_check
      _
    $region7: #{tpu_custom_call.1} parent=1 // pred_check_branch
      %20 = sbr.rel (0) target = $region9
    $region8: #{tpu_custom_call.1} parent=1 // pred_region
      _
    $region9: #{tpu_custom_call.1} parent=1 // pred_fallthru
      _
    // Predicated region
    $region10: #{tpu_custom_call.1} parent=1 // pred_check
      _
    $region11: #{tpu_custom_call.1} parent=1 // pred_check_branch
      %22 = sbr.rel (0) target = $region13
    $region12: #{tpu_custom_call.1} parent=1 // pred_region
      %23 = dma.done [#allocation3], 32
    $region13: #{tpu_custom_call.1} parent=1 // pred_fallthru
      _
    %v24 = vld [vmem:[#allocation2] sm:$0x3]
    %v25 = vld [vmem:[%s1] sm:$0x1]
    %v27 = vlaneseq
    %v28 = vshrl.u32 %v27, 7
    %v29 = vsub.s32 0, %v28
    %v30 = vrot.slane %v25, %v29
    %v32 = vadd.f32 %v24, %v30
    %vm33 = vcmask 254976
    %34 = vst.msk [vmem:[#allocation5] sm:$0x3] %vm33, %v32
    // Predicated region
    $region14: #{tpu_custom_call.1} parent=1 // pred_check
      _
    $region15: #{tpu_custom_call.1} parent=1 // pred_check_branch
      %36 = sbr.rel (0) target = $region17
    $region16: #{tpu_custom_call.1} parent=1 // pred_region
      %s38 = ssub.s32 32, 32
      %39 = vsyncadd [#allocation4], %s38
      %s41 = sshll.u32 [#allocation5], 4
      %s42 = int_to_ptr.vmem [resolvable:$true] %s41
      %44 = dma.vmem_to_hbm [thread:$0]  %s42, 32, %s2, [#allocation4]
    $region17: #{tpu_custom_call.1} parent=1 // pred_fallthru
      _
    // Predicated region
    $region18: #{tpu_custom_call.1} parent=1 // pred_check
      _
    $region19: #{tpu_custom_call.1} parent=1 // pred_check_branch
      %46 = sbr.rel (0) target = $region21
    $region20: #{tpu_custom_call.1} parent=1 // pred_region
      %47 = dma.done [#allocation4], 32
    $region21: #{tpu_custom_call.1} parent=1 // pred_fallthru
      _
    %48 = vsyncpa [#allocation3], 1
    %49 = vsyncpa [#allocation4], 1

</llo_original>
